<compile_context>
chip_gen: v6e
topology: v6e:2x2x1
jax: 0.10.0
libtpu: 0.0.40
codegen_flags: <defaults>
</compile_context>

<pallas_src>
import math

import jax
import jax.numpy as jnp
from jax.experimental import pallas as pl
from jax.experimental.pallas import tpu as pltpu

EPS = 1e-5  # nn.LayerNorm default


def _layernorm_kernel(x_ref, gb_ref, o_ref):
    # x_ref: (TR, D) tile of rows; gb_ref: (2, D) fp32 stacked [gamma; beta]
    x = x_ref[...].astype(jnp.float32)
    mean = jnp.mean(x, axis=-1, keepdims=True)
    centered = x - mean
    var = jnp.mean(centered * centered, axis=-1, keepdims=True)  # biased, matches torch
    inv = jax.lax.rsqrt(var + EPS)
    gamma = gb_ref[0:1, :]
    beta = gb_ref[1:2, :]
    o_ref[...] = (centered * inv * gamma + beta).astype(o_ref.dtype)


def _vmem_capacity_bytes() -> int:
    try:
        return int(pltpu.get_tpu_info().vmem_capacity_bytes)
    except Exception:
        return 64 * 1024 * 1024  # conservative default (v7x: 64 MiB per TensorCore)


def _round_up(x: int, m: int) -> int:
    return ((x + m - 1) // m) * m


def _choose_tiling(rows: int, d_model: int, itemsize: int):
    """Pick (row_tile, vmem_limit_bytes) for this HBM-bound row-wise op."""
    vmem_cap = _vmem_capacity_bytes()
    # Double-buffered input + output tiles.
    per_row_bytes = 2 * d_model * 2 * itemsize
    budget = int(vmem_cap * 0.4)          # leave headroom for compiler scratch etc.
    tr = max(budget // max(per_row_bytes, 1), 1)
    tr = min(tr, 1024)                    # 512-1024 rows already ~85% of HBM roofline

    # Sublane packing: 8 rows/vreg for 32-bit, 16 for bf16, 32 for 8-bit dtypes.
    pack = max(8, 32 // max(itemsize, 1))
    tr = max((tr // pack) * pack, pack)

    # Don't tile past the (padded) problem size.
    tr = min(tr, _round_up(rows, pack))

    # Keep the parallel grid axis populated (>= 2 blocks) when there is enough
    # work, so a 2-TensorCore chip (v7x) can shard the grid.
    if rows > pack and tr >= rows:
        tr = max(((rows + 1) // 2 // pack) * pack, pack)

    buf_bytes = 2 * tr * d_model * 2 * itemsize   # in + out, double-buffered
    buf_bytes += 2 * 2 * d_model * 4              # fp32 gamma/beta operand
    vmem_limit = max(buf_bytes + (4 << 20), 32 << 20)
    vmem_limit = min(vmem_limit, int(vmem_cap * 0.9))
    return tr, vmem_limit


def layer_norm(x, gamma, beta):
    orig_shape = x.shape
    d_model = orig_shape[-1]
    rows = math.prod(orig_shape[:-1]) if len(orig_shape) > 1 else 1

    x2 = x.reshape(rows, d_model)
    # Fused fp32 (2, d_model) [gamma; beta] operand: one DMA, no per-tile cast.
    gb = jnp.stack(
        [gamma.astype(jnp.float32).reshape(d_model),
         beta.astype(jnp.float32).reshape(d_model)], axis=0)

    itemsize = jnp.dtype(x.dtype).itemsize
    tr, vmem_limit = _choose_tiling(rows, d_model, itemsize)

    # cdiv grid + zero padding on the row axis; padded rows normalize harmlessly
    # (var=0 -> rsqrt(eps), no NaN) and are sliced off afterwards.
    num_blocks = pl.cdiv(rows, tr)
    padded_rows = num_blocks * tr
    if padded_rows != rows:
        x2 = jnp.pad(x2, ((0, padded_rows - rows), (0, 0)))

    # TODO(synk): d_model < 128 (or not 128-aligned) leaves the output stores
    # lane-masked; production transformer widths (multiples of 128) are lane-dense.

    out = pl.pallas_call(
        _layernorm_kernel,
        out_shape=jax.ShapeDtypeStruct((padded_rows, d_model), x.dtype),
        grid_spec=pltpu.PrefetchScalarGridSpec(
            num_scalar_prefetch=0,
            grid=(num_blocks,),
            in_specs=[
                pl.BlockSpec((tr, d_model), lambda i: (i, 0)),
                pl.BlockSpec((2, d_model), lambda i: (0, 0)),
            ],
            out_specs=pl.BlockSpec((tr, d_model), lambda i: (i, 0)),
        ),
        compiler_params=pltpu.CompilerParams(
            dimension_semantics=("parallel",),
            vmem_limit_bytes=vmem_limit,
        ),
    )(x2, gb)

    if padded_rows != rows:
        out = out[:rows]
    return out.reshape(orig_shape)


def _reference(x, gamma, beta):
    mean = jnp.mean(x, axis=-1, keepdims=True)
    var = jnp.mean((x - mean) ** 2, axis=-1, keepdims=True)
    return (x - mean) * jax.lax.rsqrt(var + EPS) * gamma + beta


if __name__ == "__main__":
    key = jax.random.PRNGKey(0)

    # Case 1: small transformer-shaped input (matches the module's forward).
    batch, seq, d_model = 2, 8, 32
    kx, kg, kb, kx2 = jax.random.split(key, 4)
    x = jax.random.normal(kx, (batch, seq, d_model), dtype=jnp.float32)
    # nn.LayerNorm defaults (weight=1, bias=0), perturbed so the affine path is used.
    gamma = jnp.ones((d_model,), jnp.float32) + 0.01 * jax.random.normal(kg, (d_model,))
    beta = jnp.zeros((d_model,), jnp.float32) + 0.01 * jax.random.normal(kb, (d_model,))

    y = jax.block_until_ready(layer_norm(x, gamma, beta))
    y_ref = _reference(x, gamma, beta)
    assert jnp.allclose(y, y_ref, atol=1e-5, rtol=1e-5), "mismatch vs reference (case 1)"

    # Case 2: row count not divisible by the tile -> exercises the cdiv + padding path.
    b2, s2, d2 = 3, 5, 128
    x_b = jax.random.normal(kx2, (b2, s2, d2), dtype=jnp.float32)
    g_b = jnp.ones((d2,), jnp.float32)
    be_b = jnp.zeros((d2,), jnp.float32)
    y_b = jax.block_until_ready(layer_norm(x_b, g_b, be_b))
    y_b_ref = _reference(x_b, g_b, be_b)
    assert jnp.allclose(y_b, y_b_ref, atol=1e-5, rtol=1e-5), "mismatch vs reference (case 2)"

    print("KERNEL_OK")
</pallas_src>

<mosaic_0001>
module attributes {stable_mosaic.version = 11 : i64} {
  func.func @_layernorm_kernel(%arg0: i32, %arg1: memref<8x32xf32, #tpu.memory_space<vmem>>, %arg2: memref<2x32xf32, #tpu.memory_space<vmem>>, %arg3: memref<8x32xf32, #tpu.memory_space<vmem>>) attributes {dimension_semantics = [#tpu.dimension_semantics<parallel>], iteration_bounds = array<i64: 2>, scalar_prefetch = 0 : i64, scratch_operands = 0 : i64, tpu.core_type = #tpu.core_type<tc>, window_params = [{transform_indices = @transform_0, window_bounds = array<i64: 8, 32>}, {pipeline_mode = #tpu.pipeline_mode<synchronous>, transform_indices = @transform_1, window_bounds = array<i64: 2, 32>}, {transform_indices = @transform_2, window_bounds = array<i64: 8, 32>}]} {
    %c0 = arith.constant 0 : index
    %c0_0 = arith.constant 0 : index
    %0 = vector.load %arg1[%c0, %c0_0] : memref<8x32xf32, #tpu.memory_space<vmem>>, vector<8x32xf32>
    %cst = arith.constant dense<0.000000e+00> : vector<8xf32>
    %1 = vector.multi_reduction <add>, %0, %cst [1] : vector<8x32xf32> to vector<8xf32>
    %2 = vector.shape_cast %1 : vector<8xf32> to vector<8x1xf32>
    %cst_1 = arith.constant 3.200000e+01 : f32
    %3 = vector.broadcast %cst_1 : f32 to vector<8x1xf32>
    %4 = arith.divf %2, %3 : vector<8x1xf32>
    %5 = vector.broadcast %4 : vector<8x1xf32> to vector<8x32xf32>
    %6 = arith.subf %0, %5 : vector<8x32xf32>
    %7 = arith.mulf %6, %6 : vector<8x32xf32>
    %cst_2 = arith.constant dense<0.000000e+00> : vector<8xf32>
    %8 = vector.multi_reduction <add>, %7, %cst_2 [1] : vector<8x32xf32> to vector<8xf32>
    %9 = vector.shape_cast %8 : vector<8xf32> to vector<8x1xf32>
    %cst_3 = arith.constant 3.200000e+01 : f32
    %10 = vector.broadcast %cst_3 : f32 to vector<8x1xf32>
    %11 = arith.divf %9, %10 : vector<8x1xf32>
    %cst_4 = arith.constant 9.99999974E-6 : f32
    %12 = vector.broadcast %cst_4 : f32 to vector<8x1xf32>
    %13 = arith.addf %11, %12 : vector<8x1xf32>
    %14 = math.rsqrt %13 : vector<8x1xf32>
    %c0_5 = arith.constant 0 : index
    %c0_6 = arith.constant 0 : index
    %15 = vector.load %arg2[%c0_5, %c0_6] : memref<2x32xf32, #tpu.memory_space<vmem>>, vector<1x32xf32>
    %c1 = arith.constant 1 : index
    %c0_7 = arith.constant 0 : index
    %16 = vector.load %arg2[%c1, %c0_7] : memref<2x32xf32, #tpu.memory_space<vmem>>, vector<1x32xf32>
    %17 = vector.broadcast %14 : vector<8x1xf32> to vector<8x32xf32>
    %18 = arith.mulf %6, %17 : vector<8x32xf32>
    %19 = vector.broadcast %15 : vector<1x32xf32> to vector<8x32xf32>
    %20 = arith.mulf %18, %19 : vector<8x32xf32>
    %21 = vector.broadcast %16 : vector<1x32xf32> to vector<8x32xf32>
    %22 = arith.addf %20, %21 : vector<8x32xf32>
    %c0_8 = arith.constant 0 : index
    %c0_9 = arith.constant 0 : index
    %23 = vector.load %arg3[%c0_8, %c0_9] : memref<8x32xf32, #tpu.memory_space<vmem>>, vector<8x32xf32>
    tpu.vector_store %arg3[%c0_8, %c0_9], %22 {strides = array<i32>} : memref<8x32xf32, #tpu.memory_space<vmem>>, vector<8x32xf32>,
    return
  }
  func.func @transform_0(%arg0: i32) -> (i32, i32) {
    %c0_i32 = arith.constant 0 : i32
    %c0_i32_0 = arith.constant 0 : i32
    return %arg0, %c0_i32 : i32, i32
  }
  func.func @transform_1(%arg0: i32) -> (i32, i32) {
    %c0_i32 = arith.constant 0 : i32
    %c0_i32_0 = arith.constant 0 : i32
    %c0_i32_1 = arith.constant 0 : i32
    return %c0_i32, %c0_i32_0 : i32, i32
  }
  func.func @transform_2(%arg0: i32) -> (i32, i32) {
    %c0_i32 = arith.constant 0 : i32
    %c0_i32_0 = arith.constant 0 : i32
    return %arg0, %c0_i32 : i32, i32
  }
}

</mosaic_0001>

<llo_original>
// kernel: tpu_custom_call.1
$region0: #{tpu_custom_call.1}
  #allocation0 [shape = 'u32[]', space=smem, size = 0x4, offset = 0x4, fixed_abs, tag = 'smem constant byte address 0x4 - core index']
  #allocation1 [shape = 'u32[144,128]{1,0:T(1,128)}', space=vmem, size = 0x12000, scoped, tag = 'internal scratch']
  %s0 = inlined_call_operand.hbm [shape: f32[16,32], index: 0, kind: input, shape index: {}]
  %s1 = inlined_call_operand.hbm [shape: f32[2,32], index: 1, kind: input, shape index: {}]
  %s2 = inlined_call_operand.hbm [shape: f32[16,32], index: 2, kind: output, shape index: {}]
  %s3 = sld [smem:[#allocation0]]
  $region49: #{tpu_custom_call.1} parent=0
    _
  %s5 = ssub.s32 1, %s3
  %s6 = scalar_select 0, %s5, %s3
  $region1: #{tpu_custom_call.1} parent=0
    #allocation2 [shape = 'u8[8192]{0}', space=vmem, size = 0x2000, scoped, tag = 'input window, operand 0']
    #allocation3 [shape = 's32[2]{0}', space=sflag, size = 0x8, scoped, tag = 'scoped memory for tpu_custom_call.1']
    #allocation4 [shape = 's32[2]{0}', space=sflag, size = 0x8, scoped, tag = 'scoped memory for tpu_custom_call.1']
    #allocation5 [shape = 'u8[1024]{0}', space=vmem, size = 0x400, scoped, tag = 'input window, operand 1, single buffered']
    #allocation6 [shape = 's32[1]{0}', space=sflag, size = 0x4, scoped, tag = 'scoped memory for tpu_custom_call.1']
    #allocation7 [shape = 'u8[8192]{0}', space=vmem, size = 0x2000, scoped, tag = 'output window, operand 0']
    %7 = vsyncpa [#allocation3], 0
    %s8 = scalar_lea.sflag [#allocation3], 1
    %9 = vsyncpa %s8, 0
    %10 = vsyncpa [#allocation6], 0
    %11 = vsyncpa [#allocation4], 0
    %s12 = scalar_lea.sflag [#allocation4], 1
    %13 = vsyncpa %s12, 0
    loop: start=0, step=1, limit=4
    $region2: #{tpu_custom_call.1} parent=1 // loop_pre_header
      _
    $region3: #{tpu_custom_call.1} parent=1 // loop_header
      %s15 = sphi 0, %s19
      %p16 = scmp.ge.s32.totalorder %s15, 4
      %s25 = sphi 0, %s27
      %s28 = sphi 0, %s25
      %s29 = sphi 0, %s28
      %s45 = sphi 0, %s29
      %s49 = sphi 0, %s49
      %s51 = sphi 0, %s49
      %s52 = sphi 0, %s51
      %s66 = sphi 0, %s52
      %s72 = sphi 0, %s74
      %s75 = sphi 0, %s72
      %s76 = sphi 0, %s75
      %s92 = sphi 0, %s76
    $region4: #{tpu_custom_call.1} parent=1 // loop_header_branch
      %18 = sbr.rel (%p16) target = $region8
    $region5: #{tpu_custom_call.1} parent=1 // loop_body
      %s20 = ssub.s32 %s15, 1
      %s21 = ssub.s32 %s15, 2
      %s22 = sadd.s32 %s15, 1
      %s23 = ssub.s32 %s15, %s22
      %p24 = scmp.eq.s32.totalorder %s23, 0
      %s26 = sadd.s32 %s25, 1
      %s27 = scalar_select %p24, %s25, %s26
      %p30 = pneg %p24
      %p31 = scmp.eq.s32.totalorder %s15, 1
      %p32 = por %p30, %p31
      %p33 = scmp.ne.s32.totalorder %s25, %s28
      %p34 = scmp.eq.s32.totalorder %s15, 0
      %p35 = por %p33, %p34
      %p36 = scmp.ne.s32.totalorder %s25, %s28
      %p37 = scmp.eq.s32.totalorder %s20, 1
      %p38 = por %p36, %p37
      %p39 = scmp.ne.s32.totalorder %s28, %s29
      %p40 = scmp.eq.s32.totalorder %s20, 0
      %p41 = por %p39, %p40
      %p42 = scmp.ne.s32.totalorder %s28, %s29
      %p43 = scmp.eq.s32.totalorder %s21, 1
      %p44 = por %p42, %p43
      %p46 = scmp.ne.s32.totalorder %s29, %s45
      %p47 = scmp.eq.s32.totalorder %s21, 0
      %p48 = por %p46, %p47
      %s50 = sadd.s32 %s49, 1
      %p53 = scmp.eq.s32.totalorder %s15, 1
      %p54 = scmp.ne.s32.totalorder %s49, %s51
      %p55 = scmp.eq.s32.totalorder %s15, 0
      %p56 = por %p54, %p55
      %p57 = scmp.ne.s32.totalorder %s49, %s51
      %p58 = scmp.eq.s32.totalorder %s20, 1
      %p59 = por %p57, %p58
      %p60 = scmp.ne.s32.totalorder %s51, %s52
      %p61 = scmp.eq.s32.totalorder %s20, 0
      %p62 = por %p60, %p61
      %p63 = scmp.ne.s32.totalorder %s51, %s52
      %p64 = scmp.eq.s32.totalorder %s21, 1
      %p65 = por %p63, %p64
      %p67 = scmp.ne.s32.totalorder %s52, %s66
      %p68 = scmp.eq.s32.totalorder %s21, 0
      %p69 = por %p67, %p68
      %s70 = ssub.s32 %s15, %s22
      %p71 = scmp.eq.s32.totalorder %s70, 0
      %s73 = sadd.s32 %s72, 1
      %s74 = scalar_select %p71, %s72, %s73
      %p77 = pneg %p71
      %p78 = scmp.eq.s32.totalorder %s15, 1
      %p79 = por %p77, %p78
      %p80 = scmp.ne.s32.totalorder %s72, %s75
      %p81 = scmp.eq.s32.totalorder %s15, 0
      %p82 = por %p80, %p81
      %p83 = scmp.ne.s32.totalorder %s72, %s75
      %p84 = scmp.eq.s32.totalorder %s20, 1
      %p85 = por %p83, %p84
      %p86 = scmp.ne.s32.totalorder %s75, %s76
      %p87 = scmp.eq.s32.totalorder %s20, 0
      %p88 = por %p86, %p87
      %p89 = scmp.ne.s32.totalorder %s75, %s76
      %p90 = scmp.eq.s32.totalorder %s21, 1
      %p91 = por %p89, %p90
      %p93 = scmp.ne.s32.totalorder %s76, %s92
      %p94 = scmp.eq.s32.totalorder %s21, 0
      %p95 = por %p93, %p94
      %p96 = scmp.le.s32.totalorder 1, %s15
      %p97 = scmp.lt.s32.totalorder %s15, 3
      %p98 = pnand %p96, %p97
      %p99 = pneg %p98
      // Predicated region
      $region9: #{tpu_custom_call.1} parent=5 // pred_check
        _
      $region10: #{tpu_custom_call.1} parent=5 // pred_check_branch
        %101 = sbr.rel (%p98) target = $region12
      $region11: #{tpu_custom_call.1} parent=5 // pred_region
        %s102 = ssub.s32 %s15, 1
        // Predicated region
        $region13: #{tpu_custom_call.1} parent=11 // pred_check
          %p103 = pneg %p62
        $region14: #{tpu_custom_call.1} parent=11 // pred_check_branch
          %105 = sbr.rel (%p103) target = $region16
        $region15: #{tpu_custom_call.1} parent=11 // pred_region
          %s107 = ssub.s32 32, 32
          %108 = vsyncadd [#allocation6], %s107
          %s110 = sshll.u32 [#allocation5], 4
          %s111 = int_to_ptr.vmem [resolvable:$true] %s110
          %113 = dma.hbm_to_vmem [thread:$0]  %s1, 32, %s111, [#allocation6]
        $region16: #{tpu_custom_call.1} parent=11 // pred_fallthru
          _
      $region12: #{tpu_custom_call.1} parent=5 // pred_fallthru
        _
      %p114 = scmp.lt.s32.totalorder %s15, 2
      // Predicated region
      $region17: #{tpu_custom_call.1} parent=5 // pred_check
        %p115 = pneg %p114
      $region18: #{tpu_custom_call.1} parent=5 // pred_check_branch
        %117 = sbr.rel (%p115) target = $region20
      $region19: #{tpu_custom_call.1} parent=5 // pred_region
        // Predicated region
        $region21: #{tpu_custom_call.1} parent=19 // pred_check
          %p118 = pneg %p35
        $region22: #{tpu_custom_call.1} parent=19 // pred_check_branch
          %120 = sbr.rel (%p118) target = $region24
        $region23: #{tpu_custom_call.1} parent=19 // pred_region
          %s121 = sand.u32 %s25, 1
          %s122 = scalar_lea.sflag [#allocation3], %s121
          %s123 = sand.u32 %s25, 1
          %s124 = smul.addr %s123, 8
          %s125 = scalar_lea.vmem [#allocation2], %s124
          %s127 = ssub.s32 128, 128
          %128 = vsyncadd %s122, %s127
          %s129 = smul.addr %s15, 128
          %s130 = scalar_lea.hbm %s0, %s129
          %s132 = sshll.u32 %s125, 4
          %s133 = int_to_ptr.vmem [resolvable:$true] %s132
          %135 = dma.hbm_to_vmem [thread:$0]  %s130, 128, %s133, %s122
        $region24: #{tpu_custom_call.1} parent=19 // pred_fallthru
          _
      $region20: #{tpu_custom_call.1} parent=5 // pred_fallthru
        _
      %p136 = scmp.le.s32.totalorder 1, %s15
      %p137 = scmp.lt.s32.totalorder %s15, 3
      %p138 = pnand %p136, %p137
      %p139 = pneg %p138
      // Predicated region
      $region25: #{tpu_custom_call.1} parent=5 // pred_check
        _
      $region26: #{tpu_custom_call.1} parent=5 // pred_check_branch
        %141 = sbr.rel (%p138) target = $region28
      $region27: #{tpu_custom_call.1} parent=5 // pred_region
        %s142 = ssub.s32 %s15, 1
        %s143 = sand.u32 %s28, 1
        %s144 = scalar_lea.sflag [#allocation3], %s143
        %s145 = sand.u32 %s28, 1
        %s146 = smul.addr %s145, 8
        %s147 = scalar_lea.vmem [#allocation2], %s146
        // Predicated region
        $region29: #{tpu_custom_call.1} parent=27 // pred_check
          %p148 = pneg %p41
        $region30: #{tpu_custom_call.1} parent=27 // pred_check_branch
          %150 = sbr.rel (%p148) target = $region32
        $region31: #{tpu_custom_call.1} parent=27 // pred_region
          %151 = dma.done %s144, 128
        $region32: #{tpu_custom_call.1} parent=27 // pred_fallthru
          _
        // Predicated region
        $region33: #{tpu_custom_call.1} parent=27 // pred_check
          %p152 = pneg %p62
        $region34: #{tpu_custom_call.1} parent=27 // pred_check_branch
          %154 = sbr.rel (%p152) target = $region36
        $region35: #{tpu_custom_call.1} parent=27 // pred_region
          %155 = dma.done [#allocation6], 32
        $region36: #{tpu_custom_call.1} parent=27 // pred_fallthru
          _
        %s156 = sand.u32 %s28, 1
        %s157 = scalar_lea.sflag [#allocation3], %s156
        %s158 = sand.u32 %s28, 1
        %s159 = smul.addr %s158, 8
        %s160 = scalar_lea.vmem [#allocation2], %s159
        %p161 = pneg %p41
        %p162 = pneg %p38
        %p163 = pneg %p62
        %p164 = pneg %p59
        %p165 = pneg %p88
        %p166 = pneg %p85
        %s167 = sand.u32 %s75, 1
        %s168 = scalar_lea.sflag [#allocation4], %s167
        %s169 = sand.u32 %s75, 1
        %s170 = smul.addr %s169, 8
        %s171 = scalar_lea.vmem [#allocation7], %s170
        %v172 = vld [vmem:[%s147] sm:$0xff]
        %vm173 = vcmask 261120
        %v174 = vsel %vm173, %v172, 0.0
        %175 = vadd.xlane.f32.xlu0 %v174
        %v176 = vpop.xlane.xlu0 %175
        %v177 = vrcp.pop 32.0
        %v178 = vmul.f32 %v176, %v177
        %v179 = vsub.f32 %v172, %v178
        %v180 = vmul.f32 %v179, %v179
        %v181 = vsel %vm173, %v180, 0.0
        %182 = vadd.xlane.f32.xlu0 %v181
        %v183 = vpop.xlane.xlu0 %182
        %v184 = vmul.f32 %v183, %v177
        %v185 = vadd.f32 %v184, 1e-05
        %v186 = vrsqrt.pop %v185
        %v187 = vld [vmem:[#allocation5] sm:$0x1]
        %v188 = vld [vmem:[#allocation5 + $0x1] sm:$0x1]
        %v189 = vmul.f32 %v179, %v186
        %v190 = vlaneseq
        %v191 = vshrl.u32 %v190, 7
        %v192 = vsub.s32 0, %v191
        %v193 = vrot.slane %v187, %v192
        %v194 = vmul.f32 %v189, %v193
        %v195 = vlaneseq
        %v196 = vshrl.u32 %v195, 7
        %v197 = vsub.s32 0, %v196
        %v198 = vrot.slane %v188, %v197
        %v199 = vadd.f32 %v194, %v198
        %200 = vst.msk [vmem:[%s171] sm:$0xff] %vm173, %v199
        %s201 = sand.u32 %s75, 1
        %s202 = scalar_lea.sflag [#allocation4], %s201
        %s203 = sand.u32 %s75, 1
        %s204 = smul.addr %s203, 8
        %s205 = scalar_lea.vmem [#allocation7], %s204
        // Predicated region
        $region37: #{tpu_custom_call.1} parent=27 // pred_check
          %p206 = pneg %p85
        $region38: #{tpu_custom_call.1} parent=27 // pred_check_branch
          %208 = sbr.rel (%p206) target = $region40
        $region39: #{tpu_custom_call.1} parent=27 // pred_region
          %s210 = ssub.s32 128, 128
          %211 = vsyncadd %s202, %s210
          %s212 = smul.addr %s20, 128
          %s213 = scalar_lea.hbm %s2, %s212
          %s215 = sshll.u32 %s205, 4
          %s216 = int_to_ptr.vmem [resolvable:$true] %s215
          %218 = dma.vmem_to_hbm [thread:$0]  %s216, 128, %s213, %s202
        $region40: #{tpu_custom_call.1} parent=27 // pred_fallthru
          _
      $region28: #{tpu_custom_call.1} parent=5 // pred_fallthru
        _
      %p219 = scmp.le.s32.totalorder 2, %s15
      // Predicated region
      $region41: #{tpu_custom_call.1} parent=5 // pred_check
        %p220 = pneg %p219
      $region42: #{tpu_custom_call.1} parent=5 // pred_check_branch
        %222 = sbr.rel (%p220) target = $region44
      $region43: #{tpu_custom_call.1} parent=5 // pred_region
        %s223 = ssub.s32 %s15, 2
        // Predicated region
        $region45: #{tpu_custom_call.1} parent=43 // pred_check
          %p224 = pneg %p91
        $region46: #{tpu_custom_call.1} parent=43 // pred_check_branch
          %226 = sbr.rel (%p224) target = $region48
        $region47: #{tpu_custom_call.1} parent=43 // pred_region
          %s227 = sand.u32 %s76, 1
          %s228 = scalar_lea.sflag [#allocation4], %s227
          %s229 = sand.u32 %s76, 1
          %s230 = smul.addr %s229, 8
          %s231 = scalar_lea.vmem [#allocation7], %s230
          %232 = dma.done %s228, 128
        $region48: #{tpu_custom_call.1} parent=43 // pred_fallthru
          _
      $region44: #{tpu_custom_call.1} parent=5 // pred_fallthru
        _
    $region6: #{tpu_custom_call.1} parent=1 // loop_footer
      %s19 = sadd.s32 1, %s15
    $region7: #{tpu_custom_call.1} parent=1 // loop_footer_branch
      %14 = sbr.rel target = $region3
    $region8: #{tpu_custom_call.1} parent=1 // loop_exit
      _
    %233 = vsyncpa [#allocation3], 1
    %s234 = scalar_lea.sflag [#allocation3], 1
    %235 = vsyncpa %s234, 1
    %236 = vsyncpa [#allocation6], 1
    %237 = vsyncpa [#allocation4], 1
    %s238 = scalar_lea.sflag [#allocation4], 1
    %239 = vsyncpa %s238, 1

</llo_original>
